<compile_context>
chip_gen: v7x
topology: tpu7x:2x2x1
jax: 0.10.0
libtpu: 0.0.40
codegen_flags: <defaults>
</compile_context>

<pallas_src>
import functools

import jax
import jax.numpy as jnp
from jax import lax
from jax.experimental import pallas as pl
from jax.experimental.pallas import tpu as pltpu


def _ds_block_kernel(x_ref, dw_ref, wf_ref, b_ref, out_ref, xpad_ref, *, H, W, C):
    """One batch tile per grid step.

    x_ref    : (nb, H, W*C)            fused NHWC input tile (unpadded)
    dw_ref   : (3, 3, W*C)             depthwise 3x3 taps, pre-tiled across W
    wf_ref   : (W*C, W*Cout)           block-diagonal pointwise weight
    b_ref    : (1, W*Cout)             fused (depthwise+pointwise) bias, tiled across W
    out_ref  : (nb, H, W*Cout)         lane-dense output tile
    xpad_ref : (nb, H+2, (W+2)*C)      VMEM scratch holding the zero halo
    """
    nb = x_ref.shape[0]
    WC = W * C

    # Build the zero halo in VMEM (no extra HBM padding pass in the wrapper).
    xpad_ref[...] = jnp.zeros_like(xpad_ref)
    xpad_ref[:, 1:H + 1, C:C + WC] = x_ref[...]

    dw = dw_ref[...].astype(jnp.float32)      # (3, 3, W*C)   read/cast once
    wf = wf_ref[...].astype(jnp.float32)      # (W*C, W*Cout)
    b = b_ref[...].astype(jnp.float32)        # (1, W*Cout)

    for bi in range(nb):                      # nb is tiny (<=4), statically unrolled
        xp = xpad_ref[bi].astype(jnp.float32)        # cast once: (H+2, (W+2)*C)
        acc = jnp.zeros((H, WC), jnp.float32)
        for ki in range(3):
            row = xp[ki:ki + H, :]                   # one H (sublane) shift per ki
            for kj in range(3):
                # kj shift happens on the fused W*C lane axis: lanes [kj*C, kj*C + W*C).
                acc = acc + row[:, kj * C:kj * C + WC] * dw[ki, kj]
        # Pointwise 1x1 conv: one 2-D MXU matmul; result is already in the lane-dense
        # (H, W*Cout) layout, so no reshape is needed before the store.
        y = jnp.dot(acc, wf, preferred_element_type=jnp.float32) + b    # (H, W*Cout)
        out_ref[bi] = y.astype(out_ref.dtype)


def depthwise_separable_block(x_nchw, dw_w, dw_b, pw_w, pw_b, *, batch_tile=None):
    """x_nchw: (N, C, H, W). dw_w: (3, 3, C), dw_b: (C,), pw_w: (C, Cout), pw_b: (Cout,).
    Returns (N, Cout, H, W)."""
    N, C, H, W = x_nchw.shape
    Cout = pw_w.shape[1]

    # Batch tile: pack several images per grid step when N is large (amortizes the
    # per-step overhead) but keep >=2 grid steps when possible so the parallel batch
    # axis can still be split across TensorCores.
    if batch_tile is None:
        batch_tile = 1
        for d in range(2, min(N, 4) + 1):
            if N % d == 0 and N // d >= 2:
                batch_tile = d
    nb = batch_tile
    assert N % nb == 0, (N, nb)

    # NCHW -> NHWC -> fused (N, H, W*C); the trailing reshape is contiguous (free).
    x_f = jnp.transpose(x_nchw, (0, 2, 3, 1)).reshape(N, H, W * C)
    # TODO(synk): keeping the surrounding model NHWC end-to-end would remove this
    # transpose pass (and the one on the output) entirely.

    # Pre-fused parameters (tiny, built once outside the kernel):
    #   depthwise taps tiled across W                  -> (3, 3, W*C)
    #   block-diagonal pointwise weight                -> (W*C, W*Cout)
    #   depthwise bias folded into the pointwise bias  -> (1, W*Cout)
    dw_f = jnp.tile(dw_w, (1, 1, W))
    wf = jnp.einsum("wv,cf->wcvf", jnp.eye(W, dtype=pw_w.dtype),
                    pw_w).reshape(W * C, W * Cout)
    b_eff = dw_b @ pw_w + pw_b
    b_f = jnp.tile(b_eff, (W,)).reshape(1, W * Cout)

    kernel = functools.partial(_ds_block_kernel, H=H, W=W, C=C)

    out_f = pl.pallas_call(
        kernel,
        out_shape=jax.ShapeDtypeStruct((N, H, W * Cout), x_nchw.dtype),
        grid_spec=pltpu.PrefetchScalarGridSpec(
            num_scalar_prefetch=0,
            grid=(N // nb,),
            in_specs=[
                pl.BlockSpec((nb, H, W * C), lambda n: (n, 0, 0)),
                pl.BlockSpec((3, 3, W * C), lambda n: (0, 0, 0)),
                pl.BlockSpec((W * C, W * Cout), lambda n: (0, 0)),
                pl.BlockSpec((1, W * Cout), lambda n: (0, 0)),
            ],
            out_specs=pl.BlockSpec((nb, H, W * Cout), lambda n: (n, 0, 0)),
            scratch_shapes=[pltpu.VMEM((nb, H + 2, (W + 2) * C), x_nchw.dtype)],
        ),
        compiler_params=pltpu.CompilerParams(
            dimension_semantics=("parallel",)),
    )(x_f, dw_f, wf, b_f)

    # (N, H, W*Cout) -> (N, H, W, Cout) is a free contiguous reshape; then back to NCHW.
    return jnp.transpose(out_f.reshape(N, H, W, Cout), (0, 3, 1, 2))


def _reference(x_nchw, dw_w, dw_b, pw_w, pw_b):
    """Pure-JAX reference using lax.conv (same semantics as PyTorch Conv2d)."""
    C = x_nchw.shape[1]
    Cout = pw_w.shape[1]
    dn = lax.conv_dimension_numbers(x_nchw.shape, (3, 3, 1, C), ("NCHW", "HWIO", "NCHW"))
    dw = lax.conv_general_dilated(
        x_nchw, dw_w[:, :, None, :], window_strides=(1, 1),
        padding=((1, 1), (1, 1)), dimension_numbers=dn, feature_group_count=C)
    dw = dw + dw_b[None, :, None, None]
    dn2 = lax.conv_dimension_numbers(dw.shape, (1, 1, C, Cout), ("NCHW", "HWIO", "NCHW"))
    pw = lax.conv_general_dilated(
        dw, pw_w[None, None, :, :], window_strides=(1, 1),
        padding=((0, 0), (0, 0)), dimension_numbers=dn2)
    return pw + pw_b[None, :, None, None]


if __name__ == "__main__":
    key = jax.random.PRNGKey(0)
    k_x, k_dw, k_db, k_pw, k_pb = jax.random.split(key, 5)

    N, C, H, W = 2, 4, 16, 16
    Cout = 8

    x = jax.random.normal(k_x, (N, C, H, W), dtype=jnp.float32)
    # Parameter shapes mirror nn.Conv2d:
    #   depthwise weight (C, 1, 3, 3)    -> stored here as (3, 3, C)
    #   pointwise weight (Cout, C, 1, 1) -> stored here as (C, Cout)
    dw_w = jax.random.normal(k_dw, (3, 3, C), dtype=jnp.float32) * 0.1
    dw_b = jax.random.normal(k_db, (C,), dtype=jnp.float32) * 0.1
    pw_w = jax.random.normal(k_pw, (C, Cout), dtype=jnp.float32) * 0.1
    pw_b = jax.random.normal(k_pb, (Cout,), dtype=jnp.float32) * 0.1

    out = depthwise_separable_block(x, dw_w, dw_b, pw_w, pw_b)
    out = jax.block_until_ready(out)

    ref = _reference(x, dw_w, dw_b, pw_w, pw_b)
    assert out.shape == (N, Cout, H, W), out.shape
    max_err = float(jnp.max(jnp.abs(out - ref)))
    assert jnp.allclose(out, ref, atol=1e-4, rtol=1e-4), max_err

    print("KERNEL_OK")
</pallas_src>

<mosaic_0001>
module attributes {stable_mosaic.version = 11 : i64} {
  func.func @_ds_block_kernel(%arg0: i32, %arg1: memref<1x16x64xf32, #tpu.memory_space<vmem>>, %arg2: memref<3x3x64xf32, #tpu.memory_space<vmem>>, %arg3: memref<64x128xf32, #tpu.memory_space<vmem>>, %arg4: memref<1x128xf32, #tpu.memory_space<vmem>>, %arg5: memref<1x16x128xf32, #tpu.memory_space<vmem>>, %arg6: memref<1x18x72xf32, #tpu.memory_space<vmem>>) attributes {dimension_semantics = [#tpu.dimension_semantics<parallel>], iteration_bounds = array<i64: 2>, scalar_prefetch = 0 : i64, scratch_operands = 1 : i64, tpu.core_type = #tpu.core_type<tc>, window_params = [{transform_indices = @transform_0, window_bounds = array<i64: 1, 16, 64>}, {pipeline_mode = #tpu.pipeline_mode<synchronous>, transform_indices = @transform_1, window_bounds = array<i64: 3, 3, 64>}, {pipeline_mode = #tpu.pipeline_mode<synchronous>, transform_indices = @transform_2, window_bounds = array<i64: 64, 128>}, {pipeline_mode = #tpu.pipeline_mode<synchronous>, transform_indices = @transform_3, window_bounds = array<i64: 1, 128>}, {transform_indices = @transform_4, window_bounds = array<i64: 1, 16, 128>}]} {
    %cst = arith.constant 0.000000e+00 : f32
    %0 = vector.broadcast %cst : f32 to vector<1x18x72xf32>
    %c0 = arith.constant 0 : index
    %c0_0 = arith.constant 0 : index
    %c0_1 = arith.constant 0 : index
    %1 = vector.load %arg6[%c0, %c0_0, %c0_1] : memref<1x18x72xf32, #tpu.memory_space<vmem>>, vector<1x18x72xf32>
    tpu.vector_store %arg6[%c0, %c0_0, %c0_1], %0 {strides = array<i32>} : memref<1x18x72xf32, #tpu.memory_space<vmem>>, vector<1x18x72xf32>,
    %c0_2 = arith.constant 0 : index
    %c0_3 = arith.constant 0 : index
    %c0_4 = arith.constant 0 : index
    %2 = vector.load %arg1[%c0_2, %c0_3, %c0_4] : memref<1x16x64xf32, #tpu.memory_space<vmem>>, vector<1x16x64xf32>
    %c0_5 = arith.constant 0 : index
    %c1 = arith.constant 1 : index
    %c4 = arith.constant 4 : index
    %3 = vector.load %arg6[%c0_5, %c1, %c4] : memref<1x18x72xf32, #tpu.memory_space<vmem>>, vector<1x16x64xf32>
    tpu.vector_store %arg6[%c0_5, %c1, %c4], %2 {strides = array<i32>} : memref<1x18x72xf32, #tpu.memory_space<vmem>>, vector<1x16x64xf32>,
    %c0_6 = arith.constant 0 : index
    %c0_7 = arith.constant 0 : index
    %c0_8 = arith.constant 0 : index
    %4 = vector.load %arg2[%c0_6, %c0_7, %c0_8] : memref<3x3x64xf32, #tpu.memory_space<vmem>>, vector<3x3x64xf32>
    %c0_9 = arith.constant 0 : index
    %c0_10 = arith.constant 0 : index
    %5 = vector.load %arg3[%c0_9, %c0_10] : memref<64x128xf32, #tpu.memory_space<vmem>>, vector<64x128xf32>
    %c0_11 = arith.constant 0 : index
    %c0_12 = arith.constant 0 : index
    %6 = vector.load %arg4[%c0_11, %c0_12] : memref<1x128xf32, #tpu.memory_space<vmem>>, vector<1x128xf32>
    %c0_13 = arith.constant 0 : index
    %c0_14 = arith.constant 0 : index
    %c0_15 = arith.constant 0 : index
    %7 = vector.load %arg6[%c0_13, %c0_14, %c0_15] : memref<1x18x72xf32, #tpu.memory_space<vmem>>, vector<1x18x72xf32>
    %8 = vector.shape_cast %7 : vector<1x18x72xf32> to vector<18x72xf32>
    %cst_16 = arith.constant 0.000000e+00 : f32
    %9 = vector.broadcast %cst_16 : f32 to vector<16x64xf32>
    %10 = vector.extract_strided_slice %8 {offsets = [0, 0], sizes = [16, 72], strides = [1, 1]} : vector<18x72xf32> to vector<16x72xf32>
    %11 = vector.extract_strided_slice %10 {offsets = [0, 0], sizes = [16, 64], strides = [1, 1]} : vector<16x72xf32> to vector<16x64xf32>
    %12 = vector.extract_strided_slice %4 {offsets = [0, 0, 0], sizes = [1, 1, 64], strides = [1, 1, 1]} : vector<3x3x64xf32> to vector<1x1x64xf32>
    %13 = vector.shape_cast %12 : vector<1x1x64xf32> to vector<64xf32>
    %14 = vector.shape_cast %13 : vector<64xf32> to vector<1x64xf32>
    %15 = vector.broadcast %14 : vector<1x64xf32> to vector<16x64xf32>
    %16 = arith.mulf %11, %15 : vector<16x64xf32>
    %17 = arith.addf %9, %16 : vector<16x64xf32>
    %18 = vector.extract_strided_slice %10 {offsets = [0, 4], sizes = [16, 64], strides = [1, 1]} : vector<16x72xf32> to vector<16x64xf32>
    %19 = vector.extract_strided_slice %4 {offsets = [0, 1, 0], sizes = [1, 1, 64], strides = [1, 1, 1]} : vector<3x3x64xf32> to vector<1x1x64xf32>
    %20 = vector.shape_cast %19 : vector<1x1x64xf32> to vector<64xf32>
    %21 = vector.shape_cast %20 : vector<64xf32> to vector<1x64xf32>
    %22 = vector.broadcast %21 : vector<1x64xf32> to vector<16x64xf32>
    %23 = arith.mulf %18, %22 : vector<16x64xf32>
    %24 = arith.addf %17, %23 : vector<16x64xf32>
    %25 = vector.extract_strided_slice %10 {offsets = [0, 8], sizes = [16, 64], strides = [1, 1]} : vector<16x72xf32> to vector<16x64xf32>
    %26 = vector.extract_strided_slice %4 {offsets = [0, 2, 0], sizes = [1, 1, 64], strides = [1, 1, 1]} : vector<3x3x64xf32> to vector<1x1x64xf32>
    %27 = vector.shape_cast %26 : vector<1x1x64xf32> to vector<64xf32>
    %28 = vector.shape_cast %27 : vector<64xf32> to vector<1x64xf32>
    %29 = vector.broadcast %28 : vector<1x64xf32> to vector<16x64xf32>
    %30 = arith.mulf %25, %29 : vector<16x64xf32>
    %31 = arith.addf %24, %30 : vector<16x64xf32>
    %32 = vector.extract_strided_slice %8 {offsets = [1, 0], sizes = [16, 72], strides = [1, 1]} : vector<18x72xf32> to vector<16x72xf32>
    %33 = vector.extract_strided_slice %32 {offsets = [0, 0], sizes = [16, 64], strides = [1, 1]} : vector<16x72xf32> to vector<16x64xf32>
    %34 = vector.extract_strided_slice %4 {offsets = [1, 0, 0], sizes = [1, 1, 64], strides = [1, 1, 1]} : vector<3x3x64xf32> to vector<1x1x64xf32>
    %35 = vector.shape_cast %34 : vector<1x1x64xf32> to vector<64xf32>
    %36 = vector.shape_cast %35 : vector<64xf32> to vector<1x64xf32>
    %37 = vector.broadcast %36 : vector<1x64xf32> to vector<16x64xf32>
    %38 = arith.mulf %33, %37 : vector<16x64xf32>
    %39 = arith.addf %31, %38 : vector<16x64xf32>
    %40 = vector.extract_strided_slice %32 {offsets = [0, 4], sizes = [16, 64], strides = [1, 1]} : vector<16x72xf32> to vector<16x64xf32>
    %41 = vector.extract_strided_slice %4 {offsets = [1, 1, 0], sizes = [1, 1, 64], strides = [1, 1, 1]} : vector<3x3x64xf32> to vector<1x1x64xf32>
    %42 = vector.shape_cast %41 : vector<1x1x64xf32> to vector<64xf32>
    %43 = vector.shape_cast %42 : vector<64xf32> to vector<1x64xf32>
    %44 = vector.broadcast %43 : vector<1x64xf32> to vector<16x64xf32>
    %45 = arith.mulf %40, %44 : vector<16x64xf32>
    %46 = arith.addf %39, %45 : vector<16x64xf32>
    %47 = vector.extract_strided_slice %32 {offsets = [0, 8], sizes = [16, 64], strides = [1, 1]} : vector<16x72xf32> to vector<16x64xf32>
    %48 = vector.extract_strided_slice %4 {offsets = [1, 2, 0], sizes = [1, 1, 64], strides = [1, 1, 1]} : vector<3x3x64xf32> to vector<1x1x64xf32>
    %49 = vector.shape_cast %48 : vector<1x1x64xf32> to vector<64xf32>
    %50 = vector.shape_cast %49 : vector<64xf32> to vector<1x64xf32>
    %51 = vector.broadcast %50 : vector<1x64xf32> to vector<16x64xf32>
    %52 = arith.mulf %47, %51 : vector<16x64xf32>
    %53 = arith.addf %46, %52 : vector<16x64xf32>
    %54 = vector.extract_strided_slice %8 {offsets = [2, 0], sizes = [16, 72], strides = [1, 1]} : vector<18x72xf32> to vector<16x72xf32>
    %55 = vector.extract_strided_slice %54 {offsets = [0, 0], sizes = [16, 64], strides = [1, 1]} : vector<16x72xf32> to vector<16x64xf32>
    %56 = vector.extract_strided_slice %4 {offsets = [2, 0, 0], sizes = [1, 1, 64], strides = [1, 1, 1]} : vector<3x3x64xf32> to vector<1x1x64xf32>
    %57 = vector.shape_cast %56 : vector<1x1x64xf32> to vector<64xf32>
    %58 = vector.shape_cast %57 : vector<64xf32> to vector<1x64xf32>
    %59 = vector.broadcast %58 : vector<1x64xf32> to vector<16x64xf32>
    %60 = arith.mulf %55, %59 : vector<16x64xf32>
    %61 = arith.addf %53, %60 : vector<16x64xf32>
    %62 = vector.extract_strided_slice %54 {offsets = [0, 4], sizes = [16, 64], strides = [1, 1]} : vector<16x72xf32> to vector<16x64xf32>
    %63 = vector.extract_strided_slice %4 {offsets = [2, 1, 0], sizes = [1, 1, 64], strides = [1, 1, 1]} : vector<3x3x64xf32> to vector<1x1x64xf32>
    %64 = vector.shape_cast %63 : vector<1x1x64xf32> to vector<64xf32>
    %65 = vector.shape_cast %64 : vector<64xf32> to vector<1x64xf32>
    %66 = vector.broadcast %65 : vector<1x64xf32> to vector<16x64xf32>
    %67 = arith.mulf %62, %66 : vector<16x64xf32>
    %68 = arith.addf %61, %67 : vector<16x64xf32>
    %69 = vector.extract_strided_slice %54 {offsets = [0, 8], sizes = [16, 64], strides = [1, 1]} : vector<16x72xf32> to vector<16x64xf32>
    %70 = vector.extract_strided_slice %4 {offsets = [2, 2, 0], sizes = [1, 1, 64], strides = [1, 1, 1]} : vector<3x3x64xf32> to vector<1x1x64xf32>
    %71 = vector.shape_cast %70 : vector<1x1x64xf32> to vector<64xf32>
    %72 = vector.shape_cast %71 : vector<64xf32> to vector<1x64xf32>
    %73 = vector.broadcast %72 : vector<1x64xf32> to vector<16x64xf32>
    %74 = arith.mulf %69, %73 : vector<16x64xf32>
    %75 = arith.addf %68, %74 : vector<16x64xf32>
    %cst_17 = arith.constant dense<0.000000e+00> : vector<16x128xf32>
    %76 = tpu.matmul %75, %5, %cst_17 {dimension_numbers = #tpu.dot_dimension_numbers<[1], [0], [0], [1], [0, 0, 1, 1], [], []>} : vector<16x64xf32>, vector<64x128xf32>, vector<16x128xf32> -> vector<16x128xf32>
    %77 = vector.broadcast %6 : vector<1x128xf32> to vector<16x128xf32>
    %78 = arith.addf %76, %77 : vector<16x128xf32>
    %c0_18 = arith.constant 0 : index
    %c0_19 = arith.constant 0 : index
    %c0_20 = arith.constant 0 : index
    %79 = vector.load %arg5[%c0_18, %c0_19, %c0_20] : memref<1x16x128xf32, #tpu.memory_space<vmem>>, vector<1x16x128xf32>
    %80 = vector.shape_cast %79 : vector<1x16x128xf32> to vector<16x128xf32>
    %81 = vector.shape_cast %78 : vector<16x128xf32> to vector<1x16x128xf32>
    tpu.vector_store %arg5[%c0_18, %c0_19, %c0_20], %81 {strides = array<i32>} : memref<1x16x128xf32, #tpu.memory_space<vmem>>, vector<1x16x128xf32>,
    return
  }
  func.func @transform_0(%arg0: i32) -> (i32, i32, i32) {
    %c0_i32 = arith.constant 0 : i32
    %c0_i32_0 = arith.constant 0 : i32
    %c0_i32_1 = arith.constant 0 : i32
    return %arg0, %c0_i32, %c0_i32_0 : i32, i32, i32
  }
  func.func @transform_1(%arg0: i32) -> (i32, i32, i32) {
    %c0_i32 = arith.constant 0 : i32
    %c0_i32_0 = arith.constant 0 : i32
    %c0_i32_1 = arith.constant 0 : i32
    %c0_i32_2 = arith.constant 0 : i32
    return %c0_i32, %c0_i32_0, %c0_i32_1 : i32, i32, i32
  }
  func.func @transform_2(%arg0: i32) -> (i32, i32) {
    %c0_i32 = arith.constant 0 : i32
    %c0_i32_0 = arith.constant 0 : i32
    %c0_i32_1 = arith.constant 0 : i32
    return %c0_i32, %c0_i32_0 : i32, i32
  }
  func.func @transform_3(%arg0: i32) -> (i32, i32) {
    %c0_i32 = arith.constant 0 : i32
    %c0_i32_0 = arith.constant 0 : i32
    %c0_i32_1 = arith.constant 0 : i32
    return %c0_i32, %c0_i32_0 : i32, i32
  }
  func.func @transform_4(%arg0: i32) -> (i32, i32, i32) {
    %c0_i32 = arith.constant 0 : i32
    %c0_i32_0 = arith.constant 0 : i32
    %c0_i32_1 = arith.constant 0 : i32
    return %arg0, %c0_i32, %c0_i32_0 : i32, i32, i32
  }
}

</mosaic_0001>

<llo_original>
// kernel: tpu_custom_call.1
$region0: #{tpu_custom_call.1}
  #allocation0 [shape = 'u32[]', space=smem, size = 0x4, offset = 0x4, fixed_abs, tag = 'smem constant byte address 0x4 - core index']
  #allocation1 [shape = 'u32[144,128]{1,0:T(1,128)}', space=vmem, size = 0x12000, scoped, tag = 'internal scratch']
  #allocation2 [shape = 'f32[1,18,72]{2,1,0:T(8,128)}', space=vmem, size = 0x3000, scoped, tag = 'scratch operand']
  %s0 = inlined_call_operand.hbm [shape: f32[2,16,64], index: 0, kind: input, shape index: {}]
  %s1 = inlined_call_operand.hbm [shape: f32[3,3,64], index: 1, kind: input, shape index: {}]
  %s2 = inlined_call_operand.hbm [shape: f32[64,128], index: 2, kind: input, shape index: {}]
  %s3 = inlined_call_operand.vmem [shape: f32[1,128], index: 3, kind: input, shape index: {}]
  %s4 = inlined_call_operand.hbm [shape: f32[2,16,128], index: 4, kind: output, shape index: {}]
  %s5 = sld [smem:[#allocation0]]
  $region61: #{tpu_custom_call.1} parent=0
    _
  %s7 = ssub.s32 1, %s5
  %s8 = scalar_select 0, %s7, %s5
  $region1: #{tpu_custom_call.1} parent=0
    #allocation3 [shape = 'u8[16384]{0}', space=vmem, size = 0x4000, scoped, tag = 'input window, operand 0']
    #allocation4 [shape = 's32[2]{0}', space=sflag, size = 0x8, scoped, tag = 'scoped memory for tpu_custom_call.1']
    #allocation5 [shape = 's32[2]{0}', space=sflag, size = 0x8, scoped, tag = 'scoped memory for tpu_custom_call.1']
    #allocation6 [shape = 'u8[6144]{0}', space=vmem, size = 0x1800, scoped, tag = 'input window, operand 1, single buffered']
    #allocation7 [shape = 's32[1]{0}', space=sflag, size = 0x4, scoped, tag = 'scoped memory for tpu_custom_call.1']
    #allocation8 [shape = 'u8[32768]{0}', space=vmem, size = 0x8000, scoped, tag = 'input window, operand 2, single buffered']
    #allocation9 [shape = 'u8[16384]{0}', space=vmem, size = 0x4000, scoped, tag = 'output window, operand 0']
    %9 = vsyncpa [#allocation4], 0
    %s10 = scalar_lea.sflag [#allocation4], 1
    %11 = vsyncpa %s10, 0
    %12 = vsyncpa [#allocation7], 0
    %13 = vsyncpa [#allocation5], 0
    %s14 = scalar_lea.sflag [#allocation5], 1
    %15 = vsyncpa %s14, 0
    loop: start=0, step=1, limit=4
    $region2: #{tpu_custom_call.1} parent=1 // loop_pre_header
      _
    $region3: #{tpu_custom_call.1} parent=1 // loop_header
      %s17 = sphi 0, %s21
      %p18 = scmp.ge.s32.totalorder %s17, 4
      %s27 = sphi 0, %s29
      %s30 = sphi 0, %s27
      %s31 = sphi 0, %s30
      %s47 = sphi 0, %s31
      %s51 = sphi 0, %s51
      %s53 = sphi 0, %s51
      %s54 = sphi 0, %s53
      %s68 = sphi 0, %s54
      %s72 = sphi 0, %s72
      %s74 = sphi 0, %s72
      %s75 = sphi 0, %s74
      %s89 = sphi 0, %s75
      %s93 = sphi 0, %s93
      %s95 = sphi 0, %s93
      %s96 = sphi 0, %s95
      %s110 = sphi 0, %s96
      %s116 = sphi 0, %s118
      %s119 = sphi 0, %s116
      %s120 = sphi 0, %s119
      %s136 = sphi 0, %s120
    $region4: #{tpu_custom_call.1} parent=1 // loop_header_branch
      %20 = sbr.rel (%p18) target = $region8
    $region5: #{tpu_custom_call.1} parent=1 // loop_body
      %s22 = ssub.s32 %s17, 1
      %s23 = ssub.s32 %s17, 2
      %s24 = sadd.s32 %s17, 1
      %s25 = ssub.s32 %s17, %s24
      %p26 = scmp.eq.s32.totalorder %s25, 0
      %s28 = sadd.s32 %s27, 1
      %s29 = scalar_select %p26, %s27, %s28
      %p32 = pneg %p26
      %p33 = scmp.eq.s32.totalorder %s17, 1
      %p34 = por %p32, %p33
      %p35 = scmp.ne.s32.totalorder %s27, %s30
      %p36 = scmp.eq.s32.totalorder %s17, 0
      %p37 = por %p35, %p36
      %p38 = scmp.ne.s32.totalorder %s27, %s30
      %p39 = scmp.eq.s32.totalorder %s22, 1
      %p40 = por %p38, %p39
      %p41 = scmp.ne.s32.totalorder %s30, %s31
      %p42 = scmp.eq.s32.totalorder %s22, 0
      %p43 = por %p41, %p42
      %p44 = scmp.ne.s32.totalorder %s30, %s31
      %p45 = scmp.eq.s32.totalorder %s23, 1
      %p46 = por %p44, %p45
      %p48 = scmp.ne.s32.totalorder %s31, %s47
      %p49 = scmp.eq.s32.totalorder %s23, 0
      %p50 = por %p48, %p49
      %s52 = sadd.s32 %s51, 1
      %p55 = scmp.eq.s32.totalorder %s17, 1
      %p56 = scmp.ne.s32.totalorder %s51, %s53
      %p57 = scmp.eq.s32.totalorder %s17, 0
      %p58 = por %p56, %p57
      %p59 = scmp.ne.s32.totalorder %s51, %s53
      %p60 = scmp.eq.s32.totalorder %s22, 1
      %p61 = por %p59, %p60
      %p62 = scmp.ne.s32.totalorder %s53, %s54
      %p63 = scmp.eq.s32.totalorder %s22, 0
      %p64 = por %p62, %p63
      %p65 = scmp.ne.s32.totalorder %s53, %s54
      %p66 = scmp.eq.s32.totalorder %s23, 1
      %p67 = por %p65, %p66
      %p69 = scmp.ne.s32.totalorder %s54, %s68
      %p70 = scmp.eq.s32.totalorder %s23, 0
      %p71 = por %p69, %p70
      %s73 = sadd.s32 %s72, 1
      %p76 = scmp.eq.s32.totalorder %s17, 1
      %p77 = scmp.ne.s32.totalorder %s72, %s74
      %p78 = scmp.eq.s32.totalorder %s17, 0
      %p79 = por %p77, %p78
      %p80 = scmp.ne.s32.totalorder %s72, %s74
      %p81 = scmp.eq.s32.totalorder %s22, 1
      %p82 = por %p80, %p81
      %p83 = scmp.ne.s32.totalorder %s74, %s75
      %p84 = scmp.eq.s32.totalorder %s22, 0
      %p85 = por %p83, %p84
      %p86 = scmp.ne.s32.totalorder %s74, %s75
      %p87 = scmp.eq.s32.totalorder %s23, 1
      %p88 = por %p86, %p87
      %p90 = scmp.ne.s32.totalorder %s75, %s89
      %p91 = scmp.eq.s32.totalorder %s23, 0
      %p92 = por %p90, %p91
      %s94 = sadd.s32 %s93, 1
      %p97 = scmp.eq.s32.totalorder %s17, 1
      %p98 = scmp.ne.s32.totalorder %s93, %s95
      %p99 = scmp.eq.s32.totalorder %s17, 0
      %p100 = por %p98, %p99
      %p101 = scmp.ne.s32.totalorder %s93, %s95
      %p102 = scmp.eq.s32.totalorder %s22, 1
      %p103 = por %p101, %p102
      %p104 = scmp.ne.s32.totalorder %s95, %s96
      %p105 = scmp.eq.s32.totalorder %s22, 0
      %p106 = por %p104, %p105
      %p107 = scmp.ne.s32.totalorder %s95, %s96
      %p108 = scmp.eq.s32.totalorder %s23, 1
      %p109 = por %p107, %p108
      %p111 = scmp.ne.s32.totalorder %s96, %s110
      %p112 = scmp.eq.s32.totalorder %s23, 0
      %p113 = por %p111, %p112
      %s114 = ssub.s32 %s17, %s24
      %p115 = scmp.eq.s32.totalorder %s114, 0
      %s117 = sadd.s32 %s116, 1
      %s118 = scalar_select %p115, %s116, %s117
      %p121 = pneg %p115
      %p122 = scmp.eq.s32.totalorder %s17, 1
      %p123 = por %p121, %p122
      %p124 = scmp.ne.s32.totalorder %s116, %s119
      %p125 = scmp.eq.s32.totalorder %s17, 0
      %p126 = por %p124, %p125
      %p127 = scmp.ne.s32.totalorder %s116, %s119
      %p128 = scmp.eq.s32.totalorder %s22, 1
      %p129 = por %p127, %p128
      %p130 = scmp.ne.s32.totalorder %s119, %s120
      %p131 = scmp.eq.s32.totalorder %s22, 0
      %p132 = por %p130, %p131
      %p133 = scmp.ne.s32.totalorder %s119, %s120
      %p134 = scmp.eq.s32.totalorder %s23, 1
      %p135 = por %p133, %p134
      %p137 = scmp.ne.s32.totalorder %s120, %s136
      %p138 = scmp.eq.s32.totalorder %s23, 0
      %p139 = por %p137, %p138
      %p140 = scmp.le.s32.totalorder 1, %s17
      %p141 = scmp.lt.s32.totalorder %s17, 3
      %p142 = pnand %p140, %p141
      %p143 = pneg %p142
      // Predicated region
      $region9: #{tpu_custom_call.1} parent=5 // pred_check
        _
      $region10: #{tpu_custom_call.1} parent=5 // pred_check_branch
        %145 = sbr.rel (%p142) target = $region12
      $region11: #{tpu_custom_call.1} parent=5 // pred_region
        %s146 = ssub.s32 %s17, 1
        // Predicated region
        $region13: #{tpu_custom_call.1} parent=11 // pred_check
          %p147 = pneg %p64
        $region14: #{tpu_custom_call.1} parent=11 // pred_check_branch
          %149 = sbr.rel (%p147) target = $region16
        $region15: #{tpu_custom_call.1} parent=11 // pred_region
          %s151 = ssub.s32 192, 192
          %152 = vsyncadd [#allocation7], %s151
          %s153 = sshll.u32 [#allocation6], 4
          %s154 = int_to_ptr.vmem [resolvable:$true] %s153
          %159 = dma.hbm_to_vmem [thread:$0]  %s1, 192, %s154, [#allocation7], 64, 64, 4
        $region16: #{tpu_custom_call.1} parent=11 // pred_fallthru
          _
        // Predicated region
        $region17: #{tpu_custom_call.1} parent=11 // pred_check
          %p160 = pneg %p85
        $region18: #{tpu_custom_call.1} parent=11 // pred_check_branch
          %162 = sbr.rel (%p160) target = $region20
        $region19: #{tpu_custom_call.1} parent=11 // pred_region
          %s164 = ssub.s32 1024, 1024
          %165 = vsyncadd [#allocation7], %s164
          %s166 = sshll.u32 [#allocation8], 4
          %s167 = int_to_ptr.vmem [resolvable:$true] %s166
          %172 = dma.hbm_to_vmem [thread:$0]  %s2, 1024, %s167, [#allocation7], 128, 128, 8
        $region20: #{tpu_custom_call.1} parent=11 // pred_fallthru
          _
        // Predicated region
        $region21: #{tpu_custom_call.1} parent=11 // pred_check
          %p173 = pneg %p106
        $region22: #{tpu_custom_call.1} parent=11 // pred_check_branch
          %175 = sbr.rel (%p173) target = $region24
        $region23: #{tpu_custom_call.1} parent=11 // pred_region
          _
        $region24: #{tpu_custom_call.1} parent=11 // pred_fallthru
          _
      $region12: #{tpu_custom_call.1} parent=5 // pred_fallthru
        _
      %p176 = scmp.lt.s32.totalorder %s17, 2
      // Predicated region
      $region25: #{tpu_custom_call.1} parent=5 // pred_check
        %p177 = pneg %p176
      $region26: #{tpu_custom_call.1} parent=5 // pred_check_branch
        %179 = sbr.rel (%p177) target = $region28
      $region27: #{tpu_custom_call.1} parent=5 // pred_region
        // Predicated region
        $region29: #{tpu_custom_call.1} parent=27 // pred_check
          %p180 = pneg %p37
        $region30: #{tpu_custom_call.1} parent=27 // pred_check_branch
          %182 = sbr.rel (%p180) target = $region32
        $region31: #{tpu_custom_call.1} parent=27 // pred_region
          %s183 = sand.u32 %s27, 1
          %s184 = scalar_lea.sflag [#allocation4], %s183
          %s185 = sand.u32 %s27, 1
          %s186 = smul.addr %s185, 16
          %s187 = scalar_lea.vmem [#allocation3], %s186
          %s189 = ssub.s32 256, 256
          %190 = vsyncadd %s184, %s189
          %s191 = smul.addr %s17, 2
          %s192 = smul.addr %s191, 128
          %s193 = scalar_lea.hbm %s0, %s192
          %s194 = sshll.u32 %s187, 4
          %s195 = int_to_ptr.vmem [resolvable:$true] %s194
          %200 = dma.hbm_to_vmem [thread:$0]  %s193, 256, %s195, %s184, 128, 128, 8
        $region32: #{tpu_custom_call.1} parent=27 // pred_fallthru
          _
      $region28: #{tpu_custom_call.1} parent=5 // pred_fallthru
        _
      %p201 = scmp.le.s32.totalorder 1, %s17
      %p202 = scmp.lt.s32.totalorder %s17, 3
      %p203 = pnand %p201, %p202
      %p204 = pneg %p203
      // Predicated region
      $region33: #{tpu_custom_call.1} parent=5 // pred_check
        _
      $region34: #{tpu_custom_call.1} parent=5 // pred_check_branch
        %206 = sbr.rel (%p203) target = $region36
      $region35: #{tpu_custom_call.1} parent=5 // pred_region
        %s207 = ssub.s32 %s17, 1
        %s208 = sand.u32 %s30, 1
        %s209 = scalar_lea.sflag [#allocation4], %s208
        %s210 = sand.u32 %s30, 1
        %s211 = smul.addr %s210, 16
        %s212 = scalar_lea.vmem [#allocation3], %s211
        // Predicated region
        $region37: #{tpu_custom_call.1} parent=35 // pred_check
          %p213 = pneg %p43
        $region38: #{tpu_custom_call.1} parent=35 // pred_check_branch
          %215 = sbr.rel (%p213) target = $region40
        $region39: #{tpu_custom_call.1} parent=35 // pred_region
          %216 = dma.done %s209, 256
        $region40: #{tpu_custom_call.1} parent=35 // pred_fallthru
          _
        // Predicated region
        $region41: #{tpu_custom_call.1} parent=35 // pred_check
          %p217 = pneg %p64
        $region42: #{tpu_custom_call.1} parent=35 // pred_check_branch
          %219 = sbr.rel (%p217) target = $region44
        $region43: #{tpu_custom_call.1} parent=35 // pred_region
          %220 = dma.done [#allocation7], 192
        $region44: #{tpu_custom_call.1} parent=35 // pred_fallthru
          _
        // Predicated region
        $region45: #{tpu_custom_call.1} parent=35 // pred_check
          %p221 = pneg %p85
        $region46: #{tpu_custom_call.1} parent=35 // pred_check_branch
          %223 = sbr.rel (%p221) target = $region48
        $region47: #{tpu_custom_call.1} parent=35 // pred_region
          %224 = dma.done [#allocation7], 1024
        $region48: #{tpu_custom_call.1} parent=35 // pred_fallthru
          _
        %s225 = sand.u32 %s30, 1
        %s226 = scalar_lea.sflag [#allocation4], %s225
        %s227 = sand.u32 %s30, 1
        %s228 = smul.addr %s227, 16
        %s229 = scalar_lea.vmem [#allocation3], %s228
        %p230 = pneg %p43
        %p231 = pneg %p40
        %p232 = pneg %p64
        %p233 = pneg %p61
        %p234 = pneg %p85
        %p235 = pneg %p82
        %p236 = pneg %p106
        %p237 = pneg %p103
        %p238 = pneg %p132
        %p239 = pneg %p129
        %s240 = sand.u32 %s119, 1
        %s241 = scalar_lea.sflag [#allocation5], %s240
        %s242 = sand.u32 %s119, 1
        %s243 = smul.addr %s242, 16
        %s244 = scalar_lea.vmem [#allocation9], %s243
        %vm245 = vcmask 588800
        %246 = vst.msk [vmem:[#allocation2] sm:$0xff] %vm245, 0.0
        %247 = vst.msk [vmem:[#allocation2 + $0x8] sm:$0xff] %vm245, 0.0
        %vm248 = vcmask 582656
        %249 = vst.msk [vmem:[#allocation2 + $0x10] sm:$0x3] %vm248, 0.0
        %v250 = vld [vmem:[%s212] sm:$0xff]
        %v251 = vld [vmem:[%s212 + $0x8] sm:$0xff]
        %254 = vrot.lane.b32.xlu0 %v250, 4
        %v255 = vpop.permute.xlu0 %254
        %256 = vrot.lane.b32.xlu0 %v251, 4
        %v257 = vpop.permute.xlu0 %256
        %vm260 = vcmask 556064
        %261 = vst.msk [vmem:[#allocation2 + $0x1] sm:$0xff] %vm260, %v255
        %262 = vst.msk [vmem:[#allocation2 + $0x9] sm:$0xff] %vm260, %v257
        %v263 = vld [vmem:[#allocation6] sm:$0x7]
        %v264 = vld [vmem:[#allocation6 + $0x4] sm:$0x7]
        %v265 = vld [vmem:[#allocation6 + $0x8] sm:$0x7]
        %v266 = vld [vmem:[#allocation8] sm:$0xff]
        %v267 = vld [vmem:[#allocation8 + $0x8] sm:$0xff]
        %v268 = vld [vmem:[#allocation8 + $0x10] sm:$0xff]
        %v269 = vld [vmem:[#allocation8 + $0x18] sm:$0xff]
        %v270 = vld [vmem:[#allocation8 + $0x20] sm:$0xff]
        %v271 = vld [vmem:[#allocation8 + $0x28] sm:$0xff]
        %v272 = vld [vmem:[#allocation8 + $0x30] sm:$0xff]
        %v273 = vld [vmem:[#allocation8 + $0x38] sm:$0xff]
        %v274 = vld [vmem:[%s3] sm:$0x1]
        %v275 = vld [vmem:[#allocation2] sm:$0xff]
        %v276 = vld [vmem:[#allocation2 + $0x8] sm:$0xff]
        %v277 = vld [vmem:[#allocation2 + $0x10] sm:$0x3]
        %v278 = vlaneseq
        %v279 = vshrl.u32 %v278, 7
        %v280 = vsub.s32 0, %v279
        %v281 = vrot.slane %v263, %v280
        %v282 = vmul.f32 %v275, %v281
        %v283 = vmul.f32 %v276, %v281
        %v284 = vadd.f32 %v282, 0.0
        %v285 = vadd.f32 %v283, 0.0
        %v286 = vlaneseq
        %v287 = vshrl.u32 %v286, 7
        %v288 = vsub.s32 1, %v287
        %v289 = vrot.slane %v263, %v288
        %291 = vrot.lane.b32.xlu0 %v289, 4
        %v292 = vpop.permute.xlu0 %291
        %v294 = vmul.f32 %v275, %v292
        %v295 = vmul.f32 %v276, %v292
        %298 = vrot.lane.b32.xlu0 %v294, 124
        %v299 = vpop.permute.xlu0 %298
        %300 = vrot.lane.b32.xlu0 %v295, 124
        %v301 = vpop.permute.xlu0 %300
        %v304 = vadd.f32 %v284, %v299
        %v305 = vadd.f32 %v285, %v301
        %v306 = vlaneseq
        %v307 = vshrl.u32 %v306, 7
        %v308 = vsub.s32 2, %v307
        %v309 = vrot.slane %v263, %v308
        %311 = vrot.lane.b32.xlu0 %v309, 8
        %v312 = vpop.permute.xlu0 %311
        %v314 = vmul.f32 %v275, %v312
        %v315 = vmul.f32 %v276, %v312
        %318 = vrot.lane.b32.xlu0 %v314, 120
        %v319 = vpop.permute.xlu0 %318
        %320 = vrot.lane.b32.xlu0 %v315, 120
        %v321 = vpop.permute.xlu0 %320
        %v324 = vadd.f32 %v304, %v319
        %v325 = vadd.f32 %v305, %v321
        %v326 = vlaneseq
        %v327 = vshrl.u32 %v326, 7
        %v328 = vsub.s32 0, %v327
        %v329 = vrot.slane %v264, %v328
        %v330 = vmul.f32 %v275, %v329
        %v331 = vmul.f32 %v276, %v329
        %v332 = vmul.f32 %v277, %v329
        %vm336 = vcmask 1046528
        %v337 = vrot.slane %v330, 1
        %v338 = vrot.slane %v331, 1
        %v339 = vsel %vm336, %v337, %v338
        %v340 = vrot.slane %v332, 1
        %v341 = vsel %vm336, %v338, %v340
        %v344 = vadd.f32 %v324, %v339
        %v345 = vadd.f32 %v325, %v341
        %v346 = vlaneseq
        %v347 = vshrl.u32 %v346, 7
        %v348 = vsub.s32 1, %v347
        %v349 = vrot.slane %v264, %v348
        %351 = vrot.lane.b32.xlu0 %v349, 4
        %v352 = vpop.permute.xlu0 %351
        %v354 = vmul.f32 %v275, %v352
        %v355 = vmul.f32 %v276, %v352
        %v356 = vmul.f32 %v277, %v352
        %v360 = vrot.slane %v354, 1
        %v361 = vrot.slane %v355, 1
        %v362 = vsel %vm336, %v360, %v361
        %v363 = vrot.slane %v356, 1
        %v364 = vsel %vm336, %v361, %v363
        %365 = vrot.lane.b32.xlu0 %v362, 124
        %v366 = vpop.permute.xlu0 %365
        %367 = vrot.lane.b32.xlu0 %v364, 124
        %v368 = vpop.permute.xlu0 %367
        %v371 = vadd.f32 %v344, %v366
        %v372 = vadd.f32 %v345, %v368
        %v373 = vlaneseq
        %v374 = vshrl.u32 %v373, 7
        %v375 = vsub.s32 2, %v374
        %v376 = vrot.slane %v264, %v375
        %378 = vrot.lane.b32.xlu0 %v376, 8
        %v379 = vpop.permute.xlu0 %378
        %v381 = vmul.f32 %v275, %v379
        %v382 = vmul.f32 %v276, %v379
        %v383 = vmul.f32 %v277, %v379
        %v387 = vrot.slane %v381, 1
        %v388 = vrot.slane %v382, 1
        %v389 = vsel %vm336, %v387, %v388
        %v390 = vrot.slane %v383, 1
        %v391 = vsel %vm336, %v388, %v390
        %392 = vrot.lane.b32.xlu0 %v389, 120
        %v393 = vpop.permute.xlu0 %392
        %394 = vrot.lane.b32.xlu0 %v391, 120
        %v395 = vpop.permute.xlu0 %394
        %v398 = vadd.f32 %v371, %v393
        %v399 = vadd.f32 %v372, %v395
        %v400 = vlaneseq
        %v401 = vshrl.u32 %v400, 7
        %v402 = vsub.s32 0, %v401
        %v403 = vrot.slane %v265, %v402
        %v404 = vmul.f32 %v275, %v403
        %v405 = vmul.f32 %v276, %v403
        %v406 = vmul.f32 %v277, %v403
        %vm410 = vcmask 1045504
        %v411 = vrot.slane %v404, 2
        %v412 = vrot.slane %v405, 2
        %v413 = vsel %vm410, %v411, %v412
        %v414 = vrot.slane %v406, 2
        %v415 = vsel %vm410, %v412, %v414
        %v418 = vadd.f32 %v398, %v413
        %v419 = vadd.f32 %v399, %v415
        %v420 = vlaneseq
        %v421 = vshrl.u32 %v420, 7
        %v422 = vsub.s32 1, %v421
        %v423 = vrot.slane %v265, %v422
        %425 = vrot.lane.b32.xlu0 %v423, 4
        %v426 = vpop.permute.xlu0 %425
        %v428 = vmul.f32 %v275, %v426
        %v429 = vmul.f32 %v276, %v426
        %v430 = vmul.f32 %v277, %v426
        %v434 = vrot.slane %v428, 2
        %v435 = vrot.slane %v429, 2
        %v436 = vsel %vm410, %v434, %v435
        %v437 = vrot.slane %v430, 2
        %v438 = vsel %vm410, %v435, %v437
        %439 = vrot.lane.b32.xlu0 %v436, 124
        %v440 = vpop.permute.xlu0 %439
        %441 = vrot.lane.b32.xlu0 %v438, 124
        %v442 = vpop.permute.xlu0 %441
        %v445 = vadd.f32 %v418, %v440
        %v446 = vadd.f32 %v419, %v442
        %v447 = vlaneseq
        %v448 = vshrl.u32 %v447, 7
        %v449 = vsub.s32 2, %v448
        %v450 = vrot.slane %v265, %v449
        %452 = vrot.lane.b32.xlu0 %v450, 8
        %v453 = vpop.permute.xlu0 %452
        %v455 = vmul.f32 %v275, %v453
        %v456 = vmul.f32 %v276, %v453
        %v457 = vmul.f32 %v277, %v453
        %v461 = vrot.slane %v455, 2
        %v462 = vrot.slane %v456, 2
        %v463 = vsel %vm410, %v461, %v462
        %v464 = vrot.slane %v457, 2
        %v465 = vsel %vm410, %v462, %v464
        %466 = vrot.lane.b32.xlu0 %v463, 120
        %v467 = vpop.permute.xlu0 %466
        %468 = vrot.lane.b32.xlu0 %v465, 120
        %v469 = vpop.permute.xlu0 %468
        %v472 = vadd.f32 %v445, %v467
        %v473 = vadd.f32 %v446, %v469
        %v475 = vlaneseq
        %v476 = vshrl.u32 %v475, 7
        %v477 = vsub.s32 0, %v476
        %v478 = vrot.slane %v274, %v477
        %vm480 = vcmask 523264
        %v482 = vsel %vm480, %v472, 0
        %v485 = vsel %vm480, %v473, 0
        %487 = vmatprep.subr.mxu0 0.0
        %488 = vmatpush1.msra.mxu0 %v266
        %489 = vmatprep.subr.mxu0 0.0
        %490 = vmatpush1.msra.mxu0 %v267
        %491 = vmatprep.subr.mxu0 0.0
        %492 = vmatpush1.msra.mxu0 %v268
        %493 = vmatprep.subr.mxu0 0.0
        %494 = vmatpush1.msra.mxu0 %v269
        %495 = vmatprep.subr.mxu0 0.0
        %496 = vmatpush1.msra.mxu0 %v270
        %497 = vmatprep.subr.mxu0 0.0
        %498 = vmatpush1.msra.mxu0 %v271
        %499 = vmatprep.subr.mxu0 0.0
        %500 = vmatpush1.msra.mxu0 %v272
        %501 = vmatprep.subr.mxu0 0.0
        %502 = vmatpush1.msra.mxu0 %v273
        %503 = vmatprep.subr.mxu0 0.0
        %504 = vmatpush1.msra.mxu0 0.0
        %505 = vmatprep.subr.mxu0 0.0
        %506 = vmatpush1.msra.mxu0 0.0
        %507 = vmatprep.subr.mxu0 0.0
        %508 = vmatpush1.msra.mxu0 0.0
        %509 = vmatprep.subr.mxu0 0.0
        %510 = vmatpush1.msra.mxu0 0.0
        %511 = vmatprep.subr.mxu0 0.0
        %512 = vmatpush1.msra.mxu0 0.0
        %513 = vmatprep.subr.mxu0 0.0
        %514 = vmatpush1.msra.mxu0 0.0
        %515 = vmatprep.subr.mxu0 0.0
        %516 = vmatpush1.msra.mxu0 0.0
        %517 = vmatprep.subr.mxu0 0.0
        %518 = vmatpush1.msra.mxu0 0.0
        %519 = vmatprep.subr.mxu0 0.0
        %520 = vmatpush1.msra.mxu0 0.0
        %521 = vmatprep.subr.mxu0 0.0
        %522 = vmatpush1.msra.mxu0 0.0
        %523 = vmatprep.subr.mxu0 0.0
        %524 = vmatpush1.msra.mxu0 0.0
        %525 = vmatprep.subr.mxu0 0.0
        %526 = vmatpush1.msra.mxu0 0.0
        %527 = vmatprep.subr.mxu0 0.0
        %528 = vmatpush1.msra.mxu0 0.0
        %529 = vmatprep.subr.mxu0 0.0
        %530 = vmatpush1.msra.mxu0 0.0
        %531 = vmatprep.subr.mxu0 0.0
        %532 = vmatpush1.msra.mxu0 0.0
        %533 = vmatprep.subr.mxu0 0.0
        %534 = vmatpush1.msra.mxu0 0.0
        %535 = vmatprep.subr.mxu0 0.0
        %536 = vmatpush1.msra.mxu0 0.0
        %537 = vmatprep.subr.mxu0 0.0
        %538 = vmatpush1.msra.mxu0 0.0
        %539 = vmatprep.subr.mxu0 0.0
        %540 = vmatpush1.msra.mxu0 0.0
        %541 = vmatprep.subr.mxu0 0.0
        %542 = vmatpush1.msra.mxu0 0.0
        %543 = vmatprep.subr.mxu0 0.0
        %544 = vmatpush1.msra.mxu0 0.0
        %545 = vmatprep.subr.mxu0 0.0
        %546 = vmatpush1.msra.mxu0 0.0
        %547 = vmatprep.subr.mxu0 0.0
        %548 = vmatpush1.msra.mxu0 0.0
        %549 = vmatprep.subr.mxu0 0.0
        %550 = vmatpush1.msra.mxu0 0.0
        %551 = vmatprep.mubr.f32.mxu0 0.0
        %552 = vmatmul.mubr.f32.gmra.mrb[0].mxu0 %v482
        %v553 = vpop.f32.mrb[0].mxu0
        %v554 = vadd.f32 %v478, %v553
        %v555 = vpop.f32.mrb[0].mxu0
        %556 = vmatprep.mubr.f32.mxu0 0.0
        %557 = vmatmul.mubr.f32.gmra.mrb[0].mxu0 %v485
        %v558 = vpop.f32.mrb[0].mxu0
        %v559 = vadd.f32 %v478, %v558
        %v560 = vpop.f32.mrb[0].mxu0
        %561 = vdwg.mxu0
        %562 = vst [vmem:[%s244] sm:$0xff] %v554
        %563 = vst [vmem:[%s244 + $0x8] sm:$0xff] %v559
        %s564 = sand.u32 %s119, 1
        %s565 = scalar_lea.sflag [#allocation5], %s564
        %s566 = sand.u32 %s119, 1
        %s567 = smul.addr %s566, 16
        %s568 = scalar_lea.vmem [#allocation9], %s567
        // Predicated region
        $region49: #{tpu_custom_call.1} parent=35 // pred_check
          %p569 = pneg %p129
        $region50: #{tpu_custom_call.1} parent=35 // pred_check_branch
          %571 = sbr.rel (%p569) target = $region52
        $region51: #{tpu_custom_call.1} parent=35 // pred_region
          %s573 = ssub.s32 256, 256
          %574 = vsyncadd %s565, %s573
          %s575 = smul.addr %s22, 2
          %s576 = smul.addr %s575, 128
          %s577 = scalar_lea.hbm %s4, %s576
          %s578 = sshll.u32 %s568, 4
          %s579 = int_to_ptr.vmem [resolvable:$true] %s578
          %584 = dma.vmem_to_hbm [thread:$0]  %s579, 256, %s577, %s565, 128, 128, 8
        $region52: #{tpu_custom_call.1} parent=35 // pred_fallthru
          _
      $region36: #{tpu_custom_call.1} parent=5 // pred_fallthru
        _
      %p585 = scmp.le.s32.totalorder 2, %s17
      // Predicated region
      $region53: #{tpu_custom_call.1} parent=5 // pred_check
        %p586 = pneg %p585
      $region54: #{tpu_custom_call.1} parent=5 // pred_check_branch
        %588 = sbr.rel (%p586) target = $region56
      $region55: #{tpu_custom_call.1} parent=5 // pred_region
        %s589 = ssub.s32 %s17, 2
        // Predicated region
        $region57: #{tpu_custom_call.1} parent=55 // pred_check
          %p590 = pneg %p135
        $region58: #{tpu_custom_call.1} parent=55 // pred_check_branch
          %592 = sbr.rel (%p590) target = $region60
        $region59: #{tpu_custom_call.1} parent=55 // pred_region
          %s593 = sand.u32 %s120, 1
          %s594 = scalar_lea.sflag [#allocation5], %s593
          %s595 = sand.u32 %s120, 1
          %s596 = smul.addr %s595, 16
          %s597 = scalar_lea.vmem [#allocation9], %s596
          %598 = dma.done %s594, 256
        $region60: #{tpu_custom_call.1} parent=55 // pred_fallthru
          _
      $region56: #{tpu_custom_call.1} parent=5 // pred_fallthru
        _
    $region6: #{tpu_custom_call.1} parent=1 // loop_footer
      %s21 = sadd.s32 1, %s17
    $region7: #{tpu_custom_call.1} parent=1 // loop_footer_branch
      %16 = sbr.rel target = $region3
    $region8: #{tpu_custom_call.1} parent=1 // loop_exit
      _
    %599 = vsyncpa [#allocation4], 1
    %s600 = scalar_lea.sflag [#allocation4], 1
    %601 = vsyncpa %s600, 1
    %602 = vsyncpa [#allocation7], 1
    %603 = vsyncpa [#allocation5], 1
    %s604 = scalar_lea.sflag [#allocation5], 1
    %605 = vsyncpa %s604, 1

</llo_original>
